<compile_context>
chip_gen: v5e
topology: v5e:2x2
jax: 0.10.0
libtpu: 0.0.40
codegen_flags: <defaults>
</compile_context>

<pallas_src>
import jax
import jax.numpy as jnp
from jax.experimental import pallas as pl
from jax.experimental.pallas import tpu as pltpu


# ----------------------------------------------------------------------------
# Production path: pure pass-through (no kernel, no HBM traffic, no launch).
# ----------------------------------------------------------------------------
def criterion_forward(loss):
    """JAX equivalent of Criterion.forward: returns {'recon_loss': loss}.

    The module performs no arithmetic, so the fastest correct implementation
    on v5e / v6e / v7x alike is to not launch anything at all.
    """
    scalar_stats = {}
    scalar_stats['recon_loss'] = loss
    return scalar_stats


# ----------------------------------------------------------------------------
# Optional Pallas-backed identity (only if a kernel output is required).
# ----------------------------------------------------------------------------
def _copy_kernel(loss_ref, out_ref):
    # recon_loss = loss : straight copy of the current VMEM tile.
    out_ref[...] = loss_ref[...]


def _round_up(x, m):
    return ((x + m - 1) // m) * m


def _sublane_multiple(itemsize):
    # Native sublane packing: 8 rows for 32-bit, 16 for 16-bit, 32 for 8-bit.
    if itemsize >= 4:
        return 8
    if itemsize == 2:
        return 16
    return 32


def _block_budget():
    """(block_bytes, vmem_limit_bytes) sized per TPU generation."""
    vmem_capacity = None
    try:
        vmem_capacity = pltpu.get_tpu_info().vmem_capacity_bytes
    except Exception:
        vmem_capacity = None
    if vmem_capacity is not None and vmem_capacity >= 100 * 1024 * 1024:
        # v5e / v6e: 128 MiB physical VMEM -> big blocks, fewer grid steps,
        # in+out double-buffered (~32 MiB live) fits a 40 MiB scoped limit.
        return 8 * 1024 * 1024, 40 * 1024 * 1024
    # v7x (64 MiB VMEM per TC) or unknown chip: stay within 32 MiB scoped VMEM.
    return 4 * 1024 * 1024, 32 * 1024 * 1024


def _choose_lanes(shape, n):
    # Lane-dense view when it is free (pure reshape, no pad): the largest of
    # 512/256/128 that exactly divides the element count.  Otherwise keep the
    # original last dim -- full-extent block dims sidestep the (8,128) rule.
    for lanes in (512, 256, 128):
        if n % lanes == 0:
            return lanes
    if len(shape) >= 2:
        return shape[-1]
    return n


def _choose_row_tile(rows, lanes, itemsize, block_bytes):
    sub = _sublane_multiple(itemsize)
    row_bytes = lanes * itemsize
    max_tr = max(sub, (block_bytes // row_bytes) // sub * sub)
    if max_tr >= rows:
        if rows >= 2 * sub:
            # Split into >= 2 blocks so v7x's two TensorCores both get work;
            # the extra grid step (~0.35 us) is negligible on v5e/v6e.
            return _round_up(pl.cdiv(rows, 2), sub)
        return rows  # single block; full-extent dims need no divisibility
    return max_tr


def _pallas_identity(loss):
    """Identity through a Pallas copy kernel (no pad, no slice, no alias)."""
    loss = jnp.asarray(loss)
    n = loss.size
    if loss.ndim == 0 or n == 0:
        return loss

    itemsize = jnp.dtype(loss.dtype).itemsize
    block_bytes, vmem_limit = _block_budget()

    lanes = _choose_lanes(loss.shape, n)
    if lanes * itemsize > block_bytes:
        # A single row would blow the block budget (e.g. a huge odd-length
        # 1-D tensor).  The op is an identity, so just pass through.
        return loss

    rows = n // lanes
    tr = _choose_row_tile(rows, lanes, itemsize, block_bytes)

    x2d = loss.reshape(rows, lanes)  # metadata-only reshape, no extra copy

    out2d = pl.pallas_call(
        _copy_kernel,
        out_shape=jax.ShapeDtypeStruct((rows, lanes), x2d.dtype),
        grid=(pl.cdiv(rows, tr),),           # boundary block masked by Pallas
        in_specs=[pl.BlockSpec((tr, lanes), lambda i: (i, 0))],
        out_specs=pl.BlockSpec((tr, lanes), lambda i: (i, 0)),
        compiler_params=pltpu.CompilerParams(
            dimension_semantics=("parallel",),  # shard rows across v7x's 2 TCs
            vmem_limit_bytes=vmem_limit,
        ),
        # NOTE: no input_output_aliases -- aliasing only reuses the HBM
        # allocation; the copy still moves 2x the bytes, so it is not a
        # traffic optimization and would donate the caller's buffer.
    )(x2d)

    return out2d.reshape(loss.shape)


def criterion_forward_pallas(loss):
    """Kernel-backed variant of Criterion.forward (identity via Pallas copy)."""
    return {'recon_loss': _pallas_identity(loss)}


if __name__ == "__main__":
    key = jax.random.PRNGKey(0)
    k0, k1, k2 = jax.random.split(key, 3)

    # --- Production path: pure pass-through (the recommended implementation).
    loss = jax.random.uniform(k0, (2, 4, 16, 16), dtype=jnp.float32)
    stats = criterion_forward(loss)
    recon = jax.block_until_ready(stats['recon_loss'])
    assert recon.shape == loss.shape and recon.dtype == loss.dtype
    assert bool(jnp.all(recon == loss))

    # Scalar loss (the common criterion case): zero-cost pass-through.
    scalar_loss = jnp.float32(0.12345)
    s = jax.block_until_ready(criterion_forward(scalar_loss)['recon_loss'])
    assert s.shape == () and bool(s == scalar_loss)

    # --- Pallas kernel path: lane-dense divisible shape (2048 elems -> (4, 512)).
    r0 = jax.block_until_ready(criterion_forward_pallas(loss)['recon_loss'])
    assert r0.shape == loss.shape and r0.dtype == loss.dtype
    assert bool(jnp.all(r0 == loss))

    # Non-lane-aligned shape: (3, 7, 50) -> (21, 50) view, two row blocks with
    # a masked boundary block (no host-side pad or slice anywhere).
    loss2 = jax.random.normal(k1, (3, 7, 50), dtype=jnp.float32)
    r2 = jax.block_until_ready(criterion_forward_pallas(loss2)['recon_loss'])
    assert r2.shape == loss2.shape and bool(jnp.all(r2 == loss2))

    # bf16 loss: exercises the dtype-aware 16-row sublane tiling and a 2-block grid.
    loss3 = jax.random.normal(k2, (64, 8, 128), dtype=jnp.float32).astype(jnp.bfloat16)
    r3 = jax.block_until_ready(criterion_forward_pallas(loss3)['recon_loss'])
    assert r3.shape == loss3.shape and r3.dtype == jnp.bfloat16
    assert bool(jnp.all(r3 == loss3))

    print("KERNEL_OK")
</pallas_src>

<mosaic_0001>
module attributes {stable_mosaic.version = 11 : i64} {
  func.func @_copy_kernel(%arg0: i32, %arg1: memref<4x512xf32, #tpu.memory_space<vmem>>, %arg2: memref<4x512xf32, #tpu.memory_space<vmem>>) attributes {dimension_semantics = [#tpu.dimension_semantics<parallel>], iteration_bounds = array<i64: 1>, scalar_prefetch = 0 : i64, scratch_operands = 0 : i64, tpu.core_type = #tpu.core_type<tc>, window_params = [{transform_indices = @transform_0, window_bounds = array<i64: 4, 512>}, {transform_indices = @transform_1, window_bounds = array<i64: 4, 512>}]} {
    %c0 = arith.constant 0 : index
    %c0_0 = arith.constant 0 : index
    %0 = vector.load %arg1[%c0, %c0_0] : memref<4x512xf32, #tpu.memory_space<vmem>>, vector<4x512xf32>
    %c0_1 = arith.constant 0 : index
    %c0_2 = arith.constant 0 : index
    %1 = vector.load %arg2[%c0_1, %c0_2] : memref<4x512xf32, #tpu.memory_space<vmem>>, vector<4x512xf32>
    tpu.vector_store %arg2[%c0_1, %c0_2], %0 {strides = array<i32>} : memref<4x512xf32, #tpu.memory_space<vmem>>, vector<4x512xf32>,
    return
  }
  func.func @transform_0(%arg0: i32) -> (i32, i32) {
    %c0_i32 = arith.constant 0 : i32
    %c0_i32_0 = arith.constant 0 : i32
    return %arg0, %c0_i32 : i32, i32
  }
  func.func @transform_1(%arg0: i32) -> (i32, i32) {
    %c0_i32 = arith.constant 0 : i32
    %c0_i32_0 = arith.constant 0 : i32
    return %arg0, %c0_i32 : i32, i32
  }
}

</mosaic_0001>

<llo_original>
// kernel: tpu_custom_call.1
$region0: #{tpu_custom_call.1}
  #allocation0 [shape = 'u32[]', space=smem, size = 0x4, offset = 0x4, fixed_abs, tag = 'smem constant byte address 0x4 - core index']
  #allocation1 [shape = 'u32[72,128]{1,0:T(1,128)}', space=vmem, size = 0x9000, scoped, tag = 'internal scratch']
  %s0 = inlined_call_operand.hbm [shape: f32[4,512], index: 0, kind: input, shape index: {}]
  %s1 = inlined_call_operand.hbm [shape: f32[4,512], index: 1, kind: output, shape index: {}]
  %s2 = sld [smem:[#allocation0]]
  $region18: #{tpu_custom_call.1} parent=0
    _
  %s4 = ssub.s32 1, %s2
  %s5 = scalar_select 0, %s4, %s2
  $region1: #{tpu_custom_call.1} parent=0
    #allocation2 [shape = 'u8[8192]{0}', space=vmem, size = 0x2000, scoped, tag = 'input window, operand 0, single buffered']
    #allocation3 [shape = 's32[1]{0}', space=sflag, size = 0x4, scoped, tag = 'scoped memory for tpu_custom_call.1']
    #allocation4 [shape = 's32[1]{0}', space=sflag, size = 0x4, scoped, tag = 'scoped memory for tpu_custom_call.1']
    #allocation5 [shape = 'u8[8192]{0}', space=vmem, size = 0x2000, scoped, tag = 'output window, operand 0, single buffered']
    %6 = vsyncpa [#allocation3], 0
    %7 = vsyncpa [#allocation4], 0
    // Predicated region
    $region2: #{tpu_custom_call.1} parent=1 // pred_check
      _
    $region3: #{tpu_custom_call.1} parent=1 // pred_check_branch
      %9 = sbr.rel (0) target = $region5
    $region4: #{tpu_custom_call.1} parent=1 // pred_region
      %11 = vsyncadd [#allocation3], 0
      %s13 = sshll.u32 %s0, 4
      %s14 = int_to_ptr.hbm [resolvable:$true] %s13
      %s15 = sshll.u32 [#allocation2], 4
      %s16 = int_to_ptr.vmem [resolvable:$true] %s15
      %18 = dma.hbm_to_vmem [thread:$0]  %s14, 256, %s16, [#allocation3]
    $region5: #{tpu_custom_call.1} parent=1 // pred_fallthru
      _
    // Predicated region
    $region6: #{tpu_custom_call.1} parent=1 // pred_check
      _
    $region7: #{tpu_custom_call.1} parent=1 // pred_check_branch
      %20 = sbr.rel (0) target = $region9
    $region8: #{tpu_custom_call.1} parent=1 // pred_region
      %22 = dma.done [#allocation3], 256
    $region9: #{tpu_custom_call.1} parent=1 // pred_fallthru
      _
    %v23 = vld [vmem:[#allocation2] sm:$0xff]
    %v24 = vld [vmem:[#allocation2 + $0x8] sm:$0xff]
    %25 = vst [vmem:[#allocation5] sm:$0xff] %v23
    %26 = vst [vmem:[#allocation5 + $0x8] sm:$0xff] %v24
    // Predicated region
    $region10: #{tpu_custom_call.1} parent=1 // pred_check
      _
    $region11: #{tpu_custom_call.1} parent=1 // pred_check_branch
      %28 = sbr.rel (0) target = $region13
    $region12: #{tpu_custom_call.1} parent=1 // pred_region
      %30 = vsyncadd [#allocation4], 0
      %s32 = sshll.u32 [#allocation5], 4
      %s33 = int_to_ptr.vmem [resolvable:$true] %s32
      %s34 = sshll.u32 %s1, 4
      %s35 = int_to_ptr.hbm [resolvable:$true] %s34
      %37 = dma.vmem_to_hbm [thread:$0]  %s33, 256, %s35, [#allocation4]
    $region13: #{tpu_custom_call.1} parent=1 // pred_fallthru
      _
    // Predicated region
    $region14: #{tpu_custom_call.1} parent=1 // pred_check
      _
    $region15: #{tpu_custom_call.1} parent=1 // pred_check_branch
      %39 = sbr.rel (0) target = $region17
    $region16: #{tpu_custom_call.1} parent=1 // pred_region
      %41 = dma.done [#allocation4], 256
    $region17: #{tpu_custom_call.1} parent=1 // pred_fallthru
      _
    %42 = vsyncpa [#allocation3], 1
    %43 = vsyncpa [#allocation4], 1

</llo_original>
